<compile_context>
chip_gen: v5e
topology: v5e:2x2
jax: 0.10.0
libtpu: 0.0.40
codegen_flags: <defaults>
</compile_context>

<pallas_src>
import math
import numpy as np
import jax
import jax.numpy as jnp
from jax.experimental import pallas as pl
from jax.experimental.pallas import tpu as pltpu


# ----------------------------------------------------------------------------
# Bicubic interpolation weight matrix (PyTorch convention: a=-0.75,
# half-pixel centers / align_corners=False, border-clamped indices).
# ----------------------------------------------------------------------------
def _bicubic_weight_matrix(in_size: int, out_size: int) -> np.ndarray:
    a = -0.75

    def cubic1(x):  # |x| <= 1
        return ((a + 2.0) * x - (a + 3.0)) * x * x + 1.0

    def cubic2(x):  # 1 < |x| < 2
        return (((x - 5.0) * x + 8.0) * x - 4.0) * a

    i = np.arange(out_size, dtype=np.float64)
    scale = in_size / out_size
    src = (i + 0.5) * scale - 0.5
    i0 = np.floor(src)
    t = src - i0

    w = np.stack(
        [cubic2(t + 1.0), cubic1(t), cubic1(1.0 - t), cubic2(2.0 - t)], axis=1
    )  # (out, 4)
    idx = i0[:, None].astype(np.int64) + np.arange(-1, 3)[None, :]
    idx = np.clip(idx, 0, in_size - 1)  # replicate border

    M = np.zeros((out_size, in_size), dtype=np.float64)
    np.add.at(M, (np.repeat(i.astype(np.int64), 4), idx.ravel()), w.ravel())
    return M.astype(np.float32)


# ----------------------------------------------------------------------------
# Band planning: the bicubic matrix is 4-tap banded, so each output tile only
# needs a narrow band of the contraction dimension.
# ----------------------------------------------------------------------------
def _plan_row_band(wh_full: np.ndarray, tm: int, in_size: int):
    """Rows: 8-aligned band starts, common band length, clamped in-bounds."""
    n = wh_full.shape[0] // tm
    lo, hi = [], []
    for i in range(n):
        nz = np.nonzero(np.any(wh_full[i * tm:(i + 1) * tm] != 0.0, axis=0))[0]
        lo.append(int(nz[0]))
        hi.append(int(nz[-1]) + 1)
    aligned = [(l // 8) * 8 for l in lo]
    band = max(h - s for h, s in zip(hi, aligned))
    band += (in_size - band) % 8          # keep (in_size - band) 8-aligned
    if band >= in_size:                   # banding not worth it -> dense
        band = in_size
        starts = np.zeros((n,), np.int32)
    else:
        starts = np.array([min(s, in_size - band) for s in aligned], np.int32)
    for i in range(n):                    # cheap wrapper-side verification
        assert 0 <= starts[i] <= lo[i]
        assert hi[i] <= starts[i] + band <= in_size
    wh_band = np.stack(
        [wh_full[i * tm:(i + 1) * tm, starts[i]:starts[i] + band] for i in range(n)]
    )
    return wh_band, starts, int(band)


def _plan_col_band(wwt_full: np.ndarray, tn: int, in_size: int):
    """Cols: 128-aligned band starts; scratch is lane-padded instead of clamped."""
    w_out = wwt_full.shape[1]
    n = w_out // tn
    lo, hi = [], []
    for j in range(n):
        nz = np.nonzero(np.any(wwt_full[:, j * tn:(j + 1) * tn] != 0.0, axis=1))[0]
        lo.append(int(nz[0]))
        hi.append(int(nz[-1]) + 1)
    starts = np.array([(l // 128) * 128 for l in lo], np.int32)
    band = int(max(h - s for h, s in zip(hi, starts)))
    if band >= in_size:                   # banding not worth it -> dense
        band = in_size
        starts = np.zeros((n,), np.int32)
    w_pad = int(max(in_size, int(starts.max()) + band))
    padded = np.zeros((w_pad, w_out), wwt_full.dtype)
    padded[:in_size] = wwt_full
    wwt_band = np.stack(
        [padded[starts[j]:starts[j] + band, j * tn:(j + 1) * tn] for j in range(n)]
    )
    return wwt_band, starts, band, w_pad


def _pick_tile(dim: int, align: int, cap: int) -> int:
    if dim <= cap:
        return dim
    t = (cap // align) * align
    while t >= align:
        if dim % t == 0:
            return t
        t -= align
    return dim  # no aligned divisor: fall back to full extent (still correct)


def _pick_batch_tile(b: int, per_plane_bytes: int, max_tb: int, budget: int) -> int:
    best = 1
    for t in range(1, min(b, max_tb) + 1):
        if b % t == 0 and t * per_plane_bytes <= budget:
            best = t
    return best


# ----------------------------------------------------------------------------
# Pallas kernel.
#   scalar prefetch: row_start (n_i,), col_start (n_j,)
#   inputs : x (TB,H,W) resident per batch tile, wh_band (1,TM,BAND_H),
#            wwt_band (1,BAND_W,TN)
#   output : (TB,TM,TN) tile
#   scratch: tmp (TB,TM,W_pad) f32 — row pass hoisted across column tiles
# ----------------------------------------------------------------------------
def _resize_kernel(row_start_ref, col_start_ref, x_ref, wh_ref, wwt_ref, o_ref,
                   tmp_ref):
    i = pl.program_id(1)
    j = pl.program_id(2)
    tb, _, w = x_ref.shape
    band_h = wh_ref.shape[2]
    band_w = wwt_ref.shape[1]
    tm = tmp_ref.shape[1]
    w_pad = tmp_ref.shape[2]

    # --- Row pass: tmp[b] = Wh_band[i] @ x[b, band, :]  (once per (b, i)) ----
    @pl.when(j == 0)
    def _():
        if w_pad > w:
            # zero the lane padding once so zero-padded Ww^T rows hit zeros
            tmp_ref[:, :, w:] = jnp.zeros((tb, tm, w_pad - w), jnp.float32)
        rs = pl.multiple_of(row_start_ref[i], 8)
        wh = wh_ref[0]                                        # (TM, band_h) bf16
        for b in range(tb):
            xb = x_ref[b, pl.ds(rs, band_h), :].astype(jnp.bfloat16)
            tmp_ref[b, :, 0:w] = jnp.dot(wh, xb,
                                         preferred_element_type=jnp.float32)

    # --- Column pass: out[b] = tmp[b, :, band] @ WwT_band[j] -----------------
    cs = pl.multiple_of(col_start_ref[j], 128)
    wwt = wwt_ref[0]                                          # (band_w, TN) bf16
    for b in range(tb):
        t = tmp_ref[b, :, pl.ds(cs, band_w)].astype(jnp.bfloat16)
        o_ref[b] = jnp.dot(t, wwt,
                           preferred_element_type=jnp.float32).astype(o_ref.dtype)


# ----------------------------------------------------------------------------
# Wrapper.
# ----------------------------------------------------------------------------
def resize_to_patch_size_divisible(img: jax.Array, patch_size: int, *,
                                   max_tm: int = 256, max_tn: int = 512,
                                   max_tb: int = 8) -> jax.Array:
    """Bicubic resize of an NCHW / CHW / HW tensor so that H and W become
    multiples of patch_size (ceil) — the forward of ResizeToPatchSizeDivisible."""
    orig_shape = img.shape
    H, W = int(orig_shape[-2]), int(orig_shape[-1])
    H_out = int(math.ceil(H / patch_size)) * patch_size
    W_out = int(math.ceil(W / patch_size)) * patch_size

    lead = orig_shape[:-2]
    B = int(np.prod(lead)) if lead else 1
    x = img.reshape(B, H, W)
    out_dtype = img.dtype
    # TODO(synk): integer (e.g. uint8) inputs would additionally need
    # round + clamp on the store to match torchvision's uint8 path.

    # Output tiling: TM multiple of 8, TN multiple of 128 (lane-dense stores)
    # unless the full extent is smaller.
    TM = _pick_tile(H_out, 8, max_tm)
    TN = _pick_tile(W_out, 128, max_tn)
    n_i, n_j = H_out // TM, W_out // TN

    # Banded bicubic weight matrices (4-tap) + per-tile band offsets.
    wh_full = _bicubic_weight_matrix(H, H_out)              # (H_out, H)
    wwt_full = _bicubic_weight_matrix(W, W_out).T           # (W,  W_out)
    wh_band_np, row_starts_np, band_h = _plan_row_band(wh_full, TM, H)
    wwt_band_np, col_starts_np, band_w, w_pad = _plan_col_band(wwt_full, TN, W)

    # Batch several planes per grid step (amortize per-step overhead, reuse the
    # resident weight tiles) while staying within a conservative VMEM budget.
    isz = np.dtype(x.dtype).itemsize
    osz = np.dtype(out_dtype).itemsize
    per_plane = 2 * H * W * isz + 2 * TM * TN * osz + TM * w_pad * 4
    TB = _pick_batch_tile(B, per_plane, max_tb, budget=28 * 1024 * 1024)
    n_b = B // TB

    wh_band = jnp.asarray(wh_band_np, dtype=jnp.bfloat16)   # (n_i, TM, band_h)
    wwt_band = jnp.asarray(wwt_band_np, dtype=jnp.bfloat16)  # (n_j, band_w, TN)
    row_starts = jnp.asarray(row_starts_np, dtype=jnp.int32)
    col_starts = jnp.asarray(col_starts_np, dtype=jnp.int32)

    cost = pl.CostEstimate(
        flops=2 * B * (H_out * band_h * W + H_out * W_out * band_w),
        transcendentals=0,
        bytes_accessed=(B * H * W * isz + B * H_out * W_out * osz
                        + wh_band.size * 2 + wwt_band.size * 2),
    )

    out = pl.pallas_call(
        _resize_kernel,
        out_shape=jax.ShapeDtypeStruct((B, H_out, W_out), out_dtype),
        grid_spec=pltpu.PrefetchScalarGridSpec(
            num_scalar_prefetch=2,
            grid=(n_b, n_i, n_j),
            in_specs=[
                pl.BlockSpec((TB, H, W), lambda b, i, j, rs, cs: (b, 0, 0)),
                pl.BlockSpec((1, TM, band_h), lambda b, i, j, rs, cs: (i, 0, 0)),
                pl.BlockSpec((1, band_w, TN), lambda b, i, j, rs, cs: (j, 0, 0)),
            ],
            out_specs=pl.BlockSpec((TB, TM, TN),
                                   lambda b, i, j, rs, cs: (b, i, j)),
            scratch_shapes=[pltpu.VMEM((TB, TM, w_pad), jnp.float32)],
        ),
        compiler_params=pltpu.CompilerParams(
            dimension_semantics=("parallel", "parallel", "arbitrary"),
            vmem_limit_bytes=64 * 1024 * 1024,
        ),
        cost_estimate=cost,
    )(row_starts, col_starts, x, wh_band, wwt_band)

    return out.reshape(*lead, H_out, W_out)


# ----------------------------------------------------------------------------
# Pure-numpy reference of the same separable bicubic formulation.
# ----------------------------------------------------------------------------
def _reference(img_np: np.ndarray, patch_size: int) -> np.ndarray:
    H, W = img_np.shape[-2:]
    H_out = int(math.ceil(H / patch_size)) * patch_size
    W_out = int(math.ceil(W / patch_size)) * patch_size
    wh = _bicubic_weight_matrix(H, H_out)      # (H_out, H)
    ww = _bicubic_weight_matrix(W, W_out)      # (W_out, W)
    tmp = np.einsum("oh,nchw->ncow", wh, img_np, optimize=True)
    return np.einsum("pw,ncow->ncop", ww, tmp, optimize=True)


if __name__ == "__main__":
    key = jax.random.PRNGKey(0)
    k1, k2 = jax.random.split(key)
    patch = 8

    # Test 1: small NCHW tensor (single tile, dense-band fallback path).
    N, C, H, W = 2, 3, 10, 13
    img1 = jax.random.uniform(k1, (N, C, H, W), dtype=jnp.float32)
    out1 = jax.block_until_ready(resize_to_patch_size_divisible(img1, patch))
    assert out1.shape == (N, C, 16, 16), out1.shape
    ref1 = _reference(np.asarray(img1), patch)
    np.testing.assert_allclose(np.asarray(out1), ref1, rtol=3e-2, atol=3e-2)

    # Test 2: larger planes with small tile caps to exercise the multi-tile
    # grid, banded contractions, scalar-prefetched band offsets and the
    # lane-padded scratch path.
    N, C, H, W = 1, 2, 250, 380
    img2 = jax.random.uniform(k2, (N, C, H, W), dtype=jnp.float32)
    out2 = jax.block_until_ready(
        resize_to_patch_size_divisible(img2, patch, max_tm=128, max_tn=128,
                                       max_tb=4))
    assert out2.shape == (N, C, 256, 384), out2.shape
    ref2 = _reference(np.asarray(img2), patch)
    np.testing.assert_allclose(np.asarray(out2), ref2, rtol=3e-2, atol=3e-2)

    print("KERNEL_OK")
</pallas_src>

<mosaic_0001>
module attributes {stable_mosaic.version = 11 : i64} {
  func.func @_resize_kernel(%arg0: i32, %arg1: i32, %arg2: i32, %arg3: memref<1xi32, #tpu.memory_space<smem>>, %arg4: memref<1xi32, #tpu.memory_space<smem>>, %arg5: memref<6x10x13xf32, #tpu.memory_space<vmem>>, %arg6: memref<1x16x10xbf16, #tpu.memory_space<vmem>>, %arg7: memref<1x13x16xbf16, #tpu.memory_space<vmem>>, %arg8: memref<6x16x16xf32, #tpu.memory_space<vmem>>, %arg9: memref<6x16x13xf32, #tpu.memory_space<vmem>>) attributes {dimension_semantics = [#tpu.dimension_semantics<parallel>, #tpu.dimension_semantics<parallel>, #tpu.dimension_semantics<arbitrary>], iteration_bounds = array<i64: 1, 1, 1>, scalar_prefetch = 2 : i64, scratch_operands = 1 : i64, tpu.core_type = #tpu.core_type<tc>, window_params = [{transform_indices = @transform_0, window_bounds = array<i64: 6, 10, 13>}, {transform_indices = @transform_1, window_bounds = array<i64: 1, 16, 10>}, {transform_indices = @transform_2, window_bounds = array<i64: 1, 13, 16>}, {transform_indices = @transform_3, window_bounds = array<i64: 6, 16, 16>}]} {
    %c0_i32 = arith.constant 0 : i32
    %0 = arith.cmpi eq, %arg2, %c0_i32 : i32
    %1 = arith.extui %0 : i1 to i32
    %c0_i32_0 = arith.constant 0 : i32
    %2 = arith.cmpi ne, %1, %c0_i32_0 : i32
    scf.if %2 {
      %56 = arith.index_cast %arg1 : i32 to index
      %57 = memref.load %arg3[%56] : memref<1xi32, #tpu.memory_space<smem>>
      %58 = tpu.assume_multiple %57, 8 : i32
      %c0_33 = arith.constant 0 : index
      %c0_34 = arith.constant 0 : index
      %c0_35 = arith.constant 0 : index
      %59 = vector.load %arg6[%c0_33, %c0_34, %c0_35] : memref<1x16x10xbf16, #tpu.memory_space<vmem>>, vector<1x16x10xbf16>
      %60 = vector.shape_cast %59 : vector<1x16x10xbf16> to vector<16x10xbf16>
      %c0_36 = arith.constant 0 : index
      %61 = arith.index_cast %58 : i32 to index
      %c0_37 = arith.constant 0 : index
      %62 = vector.load %arg5[%c0_36, %61, %c0_37] : memref<6x10x13xf32, #tpu.memory_space<vmem>>, vector<1x10x13xf32>
      %63 = vector.shape_cast %62 : vector<1x10x13xf32> to vector<10x13xf32>
      %64 = arith.truncf %63 : vector<10x13xf32> to vector<10x13xbf16>
      %cst_38 = arith.constant dense<0.000000e+00> : vector<16x13xf32>
      %65 = tpu.matmul %60, %64, %cst_38 {dimension_numbers = #tpu.dot_dimension_numbers<[1], [0], [0], [1], [0, 0, 1, 1], [], []>} : vector<16x10xbf16>, vector<10x13xbf16>, vector<16x13xf32> -> vector<16x13xf32>
      %c0_39 = arith.constant 0 : index
      %c0_40 = arith.constant 0 : index
      %c0_41 = arith.constant 0 : index
      %66 = vector.load %arg9[%c0_39, %c0_40, %c0_41] : memref<6x16x13xf32, #tpu.memory_space<vmem>>, vector<1x16x13xf32>
      %67 = vector.shape_cast %66 : vector<1x16x13xf32> to vector<16x13xf32>
      %68 = vector.shape_cast %65 : vector<16x13xf32> to vector<1x16x13xf32>
      tpu.vector_store %arg9[%c0_39, %c0_40, %c0_41], %68 {strides = array<i32>} : memref<6x16x13xf32, #tpu.memory_space<vmem>>, vector<1x16x13xf32>,
      %c1_42 = arith.constant 1 : index
      %69 = arith.index_cast %58 : i32 to index
      %c0_43 = arith.constant 0 : index
      %70 = vector.load %arg5[%c1_42, %69, %c0_43] : memref<6x10x13xf32, #tpu.memory_space<vmem>>, vector<1x10x13xf32>
      %71 = vector.shape_cast %70 : vector<1x10x13xf32> to vector<10x13xf32>
      %72 = arith.truncf %71 : vector<10x13xf32> to vector<10x13xbf16>
      %cst_44 = arith.constant dense<0.000000e+00> : vector<16x13xf32>
      %73 = tpu.matmul %60, %72, %cst_44 {dimension_numbers = #tpu.dot_dimension_numbers<[1], [0], [0], [1], [0, 0, 1, 1], [], []>} : vector<16x10xbf16>, vector<10x13xbf16>, vector<16x13xf32> -> vector<16x13xf32>
      %c1_45 = arith.constant 1 : index
      %c0_46 = arith.constant 0 : index
      %c0_47 = arith.constant 0 : index
      %74 = vector.load %arg9[%c1_45, %c0_46, %c0_47] : memref<6x16x13xf32, #tpu.memory_space<vmem>>, vector<1x16x13xf32>
      %75 = vector.shape_cast %74 : vector<1x16x13xf32> to vector<16x13xf32>
      %76 = vector.shape_cast %73 : vector<16x13xf32> to vector<1x16x13xf32>
      tpu.vector_store %arg9[%c1_45, %c0_46, %c0_47], %76 {strides = array<i32>} : memref<6x16x13xf32, #tpu.memory_space<vmem>>, vector<1x16x13xf32>,
      %c2_48 = arith.constant 2 : index
      %77 = arith.index_cast %58 : i32 to index
      %c0_49 = arith.constant 0 : index
      %78 = vector.load %arg5[%c2_48, %77, %c0_49] : memref<6x10x13xf32, #tpu.memory_space<vmem>>, vector<1x10x13xf32>
      %79 = vector.shape_cast %78 : vector<1x10x13xf32> to vector<10x13xf32>
      %80 = arith.truncf %79 : vector<10x13xf32> to vector<10x13xbf16>
      %cst_50 = arith.constant dense<0.000000e+00> : vector<16x13xf32>
      %81 = tpu.matmul %60, %80, %cst_50 {dimension_numbers = #tpu.dot_dimension_numbers<[1], [0], [0], [1], [0, 0, 1, 1], [], []>} : vector<16x10xbf16>, vector<10x13xbf16>, vector<16x13xf32> -> vector<16x13xf32>
      %c2_51 = arith.constant 2 : index
      %c0_52 = arith.constant 0 : index
      %c0_53 = arith.constant 0 : index
      %82 = vector.load %arg9[%c2_51, %c0_52, %c0_53] : memref<6x16x13xf32, #tpu.memory_space<vmem>>, vector<1x16x13xf32>
      %83 = vector.shape_cast %82 : vector<1x16x13xf32> to vector<16x13xf32>
      %84 = vector.shape_cast %81 : vector<16x13xf32> to vector<1x16x13xf32>
      tpu.vector_store %arg9[%c2_51, %c0_52, %c0_53], %84 {strides = array<i32>} : memref<6x16x13xf32, #tpu.memory_space<vmem>>, vector<1x16x13xf32>,
      %c3_54 = arith.constant 3 : index
      %85 = arith.index_cast %58 : i32 to index
      %c0_55 = arith.constant 0 : index
      %86 = vector.load %arg5[%c3_54, %85, %c0_55] : memref<6x10x13xf32, #tpu.memory_space<vmem>>, vector<1x10x13xf32>
      %87 = vector.shape_cast %86 : vector<1x10x13xf32> to vector<10x13xf32>
      %88 = arith.truncf %87 : vector<10x13xf32> to vector<10x13xbf16>
      %cst_56 = arith.constant dense<0.000000e+00> : vector<16x13xf32>
      %89 = tpu.matmul %60, %88, %cst_56 {dimension_numbers = #tpu.dot_dimension_numbers<[1], [0], [0], [1], [0, 0, 1, 1], [], []>} : vector<16x10xbf16>, vector<10x13xbf16>, vector<16x13xf32> -> vector<16x13xf32>
      %c3_57 = arith.constant 3 : index
      %c0_58 = arith.constant 0 : index
      %c0_59 = arith.constant 0 : index
      %90 = vector.load %arg9[%c3_57, %c0_58, %c0_59] : memref<6x16x13xf32, #tpu.memory_space<vmem>>, vector<1x16x13xf32>
      %91 = vector.shape_cast %90 : vector<1x16x13xf32> to vector<16x13xf32>
      %92 = vector.shape_cast %89 : vector<16x13xf32> to vector<1x16x13xf32>
      tpu.vector_store %arg9[%c3_57, %c0_58, %c0_59], %92 {strides = array<i32>} : memref<6x16x13xf32, #tpu.memory_space<vmem>>, vector<1x16x13xf32>,
      %c4_60 = arith.constant 4 : index
      %93 = arith.index_cast %58 : i32 to index
      %c0_61 = arith.constant 0 : index
      %94 = vector.load %arg5[%c4_60, %93, %c0_61] : memref<6x10x13xf32, #tpu.memory_space<vmem>>, vector<1x10x13xf32>
      %95 = vector.shape_cast %94 : vector<1x10x13xf32> to vector<10x13xf32>
      %96 = arith.truncf %95 : vector<10x13xf32> to vector<10x13xbf16>
      %cst_62 = arith.constant dense<0.000000e+00> : vector<16x13xf32>
      %97 = tpu.matmul %60, %96, %cst_62 {dimension_numbers = #tpu.dot_dimension_numbers<[1], [0], [0], [1], [0, 0, 1, 1], [], []>} : vector<16x10xbf16>, vector<10x13xbf16>, vector<16x13xf32> -> vector<16x13xf32>
      %c4_63 = arith.constant 4 : index
      %c0_64 = arith.constant 0 : index
      %c0_65 = arith.constant 0 : index
      %98 = vector.load %arg9[%c4_63, %c0_64, %c0_65] : memref<6x16x13xf32, #tpu.memory_space<vmem>>, vector<1x16x13xf32>
      %99 = vector.shape_cast %98 : vector<1x16x13xf32> to vector<16x13xf32>
      %100 = vector.shape_cast %97 : vector<16x13xf32> to vector<1x16x13xf32>
      tpu.vector_store %arg9[%c4_63, %c0_64, %c0_65], %100 {strides = array<i32>} : memref<6x16x13xf32, #tpu.memory_space<vmem>>, vector<1x16x13xf32>,
      %c5_66 = arith.constant 5 : index
      %101 = arith.index_cast %58 : i32 to index
      %c0_67 = arith.constant 0 : index
      %102 = vector.load %arg5[%c5_66, %101, %c0_67] : memref<6x10x13xf32, #tpu.memory_space<vmem>>, vector<1x10x13xf32>
      %103 = vector.shape_cast %102 : vector<1x10x13xf32> to vector<10x13xf32>
      %104 = arith.truncf %103 : vector<10x13xf32> to vector<10x13xbf16>
      %cst_68 = arith.constant dense<0.000000e+00> : vector<16x13xf32>
      %105 = tpu.matmul %60, %104, %cst_68 {dimension_numbers = #tpu.dot_dimension_numbers<[1], [0], [0], [1], [0, 0, 1, 1], [], []>} : vector<16x10xbf16>, vector<10x13xbf16>, vector<16x13xf32> -> vector<16x13xf32>
      %c5_69 = arith.constant 5 : index
      %c0_70 = arith.constant 0 : index
      %c0_71 = arith.constant 0 : index
      %106 = vector.load %arg9[%c5_69, %c0_70, %c0_71] : memref<6x16x13xf32, #tpu.memory_space<vmem>>, vector<1x16x13xf32>
      %107 = vector.shape_cast %106 : vector<1x16x13xf32> to vector<16x13xf32>
      %108 = vector.shape_cast %105 : vector<16x13xf32> to vector<1x16x13xf32>
      tpu.vector_store %arg9[%c5_69, %c0_70, %c0_71], %108 {strides = array<i32>} : memref<6x16x13xf32, #tpu.memory_space<vmem>>, vector<1x16x13xf32>,
    } else {
    }
    %3 = arith.index_cast %arg2 : i32 to index
    %4 = memref.load %arg4[%3] : memref<1xi32, #tpu.memory_space<smem>>
    %5 = tpu.assume_multiple %4, 128 : i32
    %c0 = arith.constant 0 : index
    %c0_1 = arith.constant 0 : index
    %c0_2 = arith.constant 0 : index
    %6 = vector.load %arg7[%c0, %c0_1, %c0_2] : memref<1x13x16xbf16, #tpu.memory_space<vmem>>, vector<1x13x16xbf16>
    %7 = vector.shape_cast %6 : vector<1x13x16xbf16> to vector<13x16xbf16>
    %c0_3 = arith.constant 0 : index
    %c0_4 = arith.constant 0 : index
    %8 = arith.index_cast %5 : i32 to index
    %9 = vector.load %arg9[%c0_3, %c0_4, %8] : memref<6x16x13xf32, #tpu.memory_space<vmem>>, vector<1x16x13xf32>
    %10 = vector.shape_cast %9 : vector<1x16x13xf32> to vector<16x13xf32>
    %11 = arith.truncf %10 : vector<16x13xf32> to vector<16x13xbf16>
    %cst = arith.constant dense<0.000000e+00> : vector<16x16xf32>
    %12 = tpu.matmul %11, %7, %cst {dimension_numbers = #tpu.dot_dimension_numbers<[1], [0], [0], [1], [0, 0, 1, 1], [], []>} : vector<16x13xbf16>, vector<13x16xbf16>, vector<16x16xf32> -> vector<16x16xf32>
    %c0_5 = arith.constant 0 : index
    %c0_6 = arith.constant 0 : index
    %c0_7 = arith.constant 0 : index
    %13 = vector.load %arg8[%c0_5, %c0_6, %c0_7] : memref<6x16x16xf32, #tpu.memory_space<vmem>>, vector<1x16x16xf32>
    %14 = vector.shape_cast %13 : vector<1x16x16xf32> to vector<16x16xf32>
    %15 = vector.shape_cast %12 : vector<16x16xf32> to vector<1x16x16xf32>
    tpu.vector_store %arg8[%c0_5, %c0_6, %c0_7], %15 {strides = array<i32>} : memref<6x16x16xf32, #tpu.memory_space<vmem>>, vector<1x16x16xf32>,
    %c1 = arith.constant 1 : index
    %c0_8 = arith.constant 0 : index
    %16 = arith.index_cast %5 : i32 to index
    %17 = vector.load %arg9[%c1, %c0_8, %16] : memref<6x16x13xf32, #tpu.memory_space<vmem>>, vector<1x16x13xf32>
    %18 = vector.shape_cast %17 : vector<1x16x13xf32> to vector<16x13xf32>
    %19 = arith.truncf %18 : vector<16x13xf32> to vector<16x13xbf16>
    %cst_9 = arith.constant dense<0.000000e+00> : vector<16x16xf32>
    %20 = tpu.matmul %19, %7, %cst_9 {dimension_numbers = #tpu.dot_dimension_numbers<[1], [0], [0], [1], [0, 0, 1, 1], [], []>} : vector<16x13xbf16>, vector<13x16xbf16>, vector<16x16xf32> -> vector<16x16xf32>
    %c1_10 = arith.constant 1 : index
    %c0_11 = arith.constant 0 : index
    %c0_12 = arith.constant 0 : index
    %21 = vector.load %arg8[%c1_10, %c0_11, %c0_12] : memref<6x16x16xf32, #tpu.memory_space<vmem>>, vector<1x16x16xf32>
    %22 = vector.shape_cast %21 : vector<1x16x16xf32> to vector<16x16xf32>
    %23 = vector.shape_cast %20 : vector<16x16xf32> to vector<1x16x16xf32>
    tpu.vector_store %arg8[%c1_10, %c0_11, %c0_12], %23 {strides = array<i32>} : memref<6x16x16xf32, #tpu.memory_space<vmem>>, vector<1x16x16xf32>,
    %c2 = arith.constant 2 : index
    %c0_13 = arith.constant 0 : index
    %24 = arith.index_cast %5 : i32 to index
    %25 = vector.load %arg9[%c2, %c0_13, %24] : memref<6x16x13xf32, #tpu.memory_space<vmem>>, vector<1x16x13xf32>
    %26 = vector.shape_cast %25 : vector<1x16x13xf32> to vector<16x13xf32>
    %27 = arith.truncf %26 : vector<16x13xf32> to vector<16x13xbf16>
    %cst_14 = arith.constant dense<0.000000e+00> : vector<16x16xf32>
    %28 = tpu.matmul %27, %7, %cst_14 {dimension_numbers = #tpu.dot_dimension_numbers<[1], [0], [0], [1], [0, 0, 1, 1], [], []>} : vector<16x13xbf16>, vector<13x16xbf16>, vector<16x16xf32> -> vector<16x16xf32>
    %c2_15 = arith.constant 2 : index
    %c0_16 = arith.constant 0 : index
    %c0_17 = arith.constant 0 : index
    %29 = vector.load %arg8[%c2_15, %c0_16, %c0_17] : memref<6x16x16xf32, #tpu.memory_space<vmem>>, vector<1x16x16xf32>
    %30 = vector.shape_cast %29 : vector<1x16x16xf32> to vector<16x16xf32>
    %31 = vector.shape_cast %28 : vector<16x16xf32> to vector<1x16x16xf32>
    tpu.vector_store %arg8[%c2_15, %c0_16, %c0_17], %31 {strides = array<i32>} : memref<6x16x16xf32, #tpu.memory_space<vmem>>, vector<1x16x16xf32>,
    %c3 = arith.constant 3 : index
    %c0_18 = arith.constant 0 : index
    %32 = arith.index_cast %5 : i32 to index
    %33 = vector.load %arg9[%c3, %c0_18, %32] : memref<6x16x13xf32, #tpu.memory_space<vmem>>, vector<1x16x13xf32>
    %34 = vector.shape_cast %33 : vector<1x16x13xf32> to vector<16x13xf32>
    %35 = arith.truncf %34 : vector<16x13xf32> to vector<16x13xbf16>
    %cst_19 = arith.constant dense<0.000000e+00> : vector<16x16xf32>
    %36 = tpu.matmul %35, %7, %cst_19 {dimension_numbers = #tpu.dot_dimension_numbers<[1], [0], [0], [1], [0, 0, 1, 1], [], []>} : vector<16x13xbf16>, vector<13x16xbf16>, vector<16x16xf32> -> vector<16x16xf32>
    %c3_20 = arith.constant 3 : index
    %c0_21 = arith.constant 0 : index
    %c0_22 = arith.constant 0 : index
    %37 = vector.load %arg8[%c3_20, %c0_21, %c0_22] : memref<6x16x16xf32, #tpu.memory_space<vmem>>, vector<1x16x16xf32>
    %38 = vector.shape_cast %37 : vector<1x16x16xf32> to vector<16x16xf32>
    %39 = vector.shape_cast %36 : vector<16x16xf32> to vector<1x16x16xf32>
    tpu.vector_store %arg8[%c3_20, %c0_21, %c0_22], %39 {strides = array<i32>} : memref<6x16x16xf32, #tpu.memory_space<vmem>>, vector<1x16x16xf32>,
    %c4 = arith.constant 4 : index
    %c0_23 = arith.constant 0 : index
    %40 = arith.index_cast %5 : i32 to index
    %41 = vector.load %arg9[%c4, %c0_23, %40] : memref<6x16x13xf32, #tpu.memory_space<vmem>>, vector<1x16x13xf32>
    %42 = vector.shape_cast %41 : vector<1x16x13xf32> to vector<16x13xf32>
    %43 = arith.truncf %42 : vector<16x13xf32> to vector<16x13xbf16>
    %cst_24 = arith.constant dense<0.000000e+00> : vector<16x16xf32>
    %44 = tpu.matmul %43, %7, %cst_24 {dimension_numbers = #tpu.dot_dimension_numbers<[1], [0], [0], [1], [0, 0, 1, 1], [], []>} : vector<16x13xbf16>, vector<13x16xbf16>, vector<16x16xf32> -> vector<16x16xf32>
    %c4_25 = arith.constant 4 : index
    %c0_26 = arith.constant 0 : index
    %c0_27 = arith.constant 0 : index
    %45 = vector.load %arg8[%c4_25, %c0_26, %c0_27] : memref<6x16x16xf32, #tpu.memory_space<vmem>>, vector<1x16x16xf32>
    %46 = vector.shape_cast %45 : vector<1x16x16xf32> to vector<16x16xf32>
    %47 = vector.shape_cast %44 : vector<16x16xf32> to vector<1x16x16xf32>
    tpu.vector_store %arg8[%c4_25, %c0_26, %c0_27], %47 {strides = array<i32>} : memref<6x16x16xf32, #tpu.memory_space<vmem>>, vector<1x16x16xf32>,
    %c5 = arith.constant 5 : index
    %c0_28 = arith.constant 0 : index
    %48 = arith.index_cast %5 : i32 to index
    %49 = vector.load %arg9[%c5, %c0_28, %48] : memref<6x16x13xf32, #tpu.memory_space<vmem>>, vector<1x16x13xf32>
    %50 = vector.shape_cast %49 : vector<1x16x13xf32> to vector<16x13xf32>
    %51 = arith.truncf %50 : vector<16x13xf32> to vector<16x13xbf16>
    %cst_29 = arith.constant dense<0.000000e+00> : vector<16x16xf32>
    %52 = tpu.matmul %51, %7, %cst_29 {dimension_numbers = #tpu.dot_dimension_numbers<[1], [0], [0], [1], [0, 0, 1, 1], [], []>} : vector<16x13xbf16>, vector<13x16xbf16>, vector<16x16xf32> -> vector<16x16xf32>
    %c5_30 = arith.constant 5 : index
    %c0_31 = arith.constant 0 : index
    %c0_32 = arith.constant 0 : index
    %53 = vector.load %arg8[%c5_30, %c0_31, %c0_32] : memref<6x16x16xf32, #tpu.memory_space<vmem>>, vector<1x16x16xf32>
    %54 = vector.shape_cast %53 : vector<1x16x16xf32> to vector<16x16xf32>
    %55 = vector.shape_cast %52 : vector<16x16xf32> to vector<1x16x16xf32>
    tpu.vector_store %arg8[%c5_30, %c0_31, %c0_32], %55 {strides = array<i32>} : memref<6x16x16xf32, #tpu.memory_space<vmem>>, vector<1x16x16xf32>,
    return
  }
  func.func @transform_0(%arg0: i32, %arg1: i32, %arg2: i32, %arg3: memref<1xi32, #tpu.memory_space<smem>>, %arg4: memref<1xi32, #tpu.memory_space<smem>>) -> (i32, i32, i32) {
    %c0_i32 = arith.constant 0 : i32
    %c0_i32_0 = arith.constant 0 : i32
    %c0_i32_1 = arith.constant 0 : i32
    return %arg0, %c0_i32, %c0_i32_0 : i32, i32, i32
  }
  func.func @transform_1(%arg0: i32, %arg1: i32, %arg2: i32, %arg3: memref<1xi32, #tpu.memory_space<smem>>, %arg4: memref<1xi32, #tpu.memory_space<smem>>) -> (i32, i32, i32) {
    %c0_i32 = arith.constant 0 : i32
    %c0_i32_0 = arith.constant 0 : i32
    %c0_i32_1 = arith.constant 0 : i32
    return %arg1, %c0_i32, %c0_i32_0 : i32, i32, i32
  }
  func.func @transform_2(%arg0: i32, %arg1: i32, %arg2: i32, %arg3: memref<1xi32, #tpu.memory_space<smem>>, %arg4: memref<1xi32, #tpu.memory_space<smem>>) -> (i32, i32, i32) {
    %c0_i32 = arith.constant 0 : i32
    %c0_i32_0 = arith.constant 0 : i32
    %c0_i32_1 = arith.constant 0 : i32
    return %arg2, %c0_i32, %c0_i32_0 : i32, i32, i32
  }
  func.func @transform_3(%arg0: i32, %arg1: i32, %arg2: i32, %arg3: memref<1xi32, #tpu.memory_space<smem>>, %arg4: memref<1xi32, #tpu.memory_space<smem>>) -> (i32, i32, i32) {
    %c0_i32 = arith.constant 0 : i32
    return %arg0, %arg1, %arg2 : i32, i32, i32
  }
}

</mosaic_0001>

<llo_original>
// kernel: tpu_custom_call.1
$region0: #{tpu_custom_call.1}
  #allocation0 [shape = 'u32[]', space=smem, size = 0x4, offset = 0x4, fixed_abs, tag = 'smem constant byte address 0x4 - core index']
  #allocation1 [shape = 'u32[72,128]{1,0:T(1,128)}', space=vmem, size = 0x9000, scoped, tag = 'internal scratch']
  #allocation2 [shape = 'f32[6,16,13]{2,1,0:T(8,128)}', space=vmem, size = 0xc000, scoped, tag = 'scratch operand']
  #allocation3 [shape = 's32[1]{0}', space=sflag, size = 0x4, scoped, tag = 'scoped memory for tpu_custom_call.1']
  #allocation4 [shape = 's32[1]{0:T(128)S(6)}', space=smem, size = 0x200, scoped, tag = 'prefetched SMEM operand 0']
  #allocation5 [shape = 's32[1]{0:T(128)S(6)}', space=smem, size = 0x200, scoped, tag = 'prefetched SMEM operand 1']
  %s0 = inlined_call_operand.<no memory space> [shape: s32[1], index: 0, kind: input, shape index: {}]
  %s1 = inlined_call_operand.<no memory space> [shape: s32[1], index: 1, kind: input, shape index: {}]
  %s2 = inlined_call_operand.vmem [shape: f32[6,10,13], index: 2, kind: input, shape index: {}]
  %s3 = inlined_call_operand.vmem [shape: bf16[1,16,10], index: 3, kind: input, shape index: {}]
  %s4 = inlined_call_operand.vmem [shape: bf16[1,13,16], index: 4, kind: input, shape index: {}]
  %s5 = inlined_call_operand.hbm [shape: f32[6,16,16], index: 5, kind: output, shape index: {}]
  %s6 = sld [smem:[#allocation0]]
  $region26: #{tpu_custom_call.1} parent=0
    _
  %s8 = ssub.s32 1, %s6
  %s9 = scalar_select 0, %s8, %s6
  %10 = sst [smem:[#allocation4]] %s0
  %11 = sst [smem:[#allocation5]] %s1
  $region1: #{tpu_custom_call.1} parent=0
    #allocation6 [shape = 'u8[49152]{0}', space=vmem, size = 0xc000, scoped, tag = 'output window, operand 0, single buffered']
    #allocation7 [shape = 's32[1]{0}', space=sflag, size = 0x4, scoped, tag = 'scoped memory for tpu_custom_call.1']
    %12 = vsyncpa [#allocation7], 0
    // Predicated region
    $region2: #{tpu_custom_call.1} parent=1 // pred_check
      _
    $region3: #{tpu_custom_call.1} parent=1 // pred_check_branch
      %14 = sbr.rel (0) target = $region5
    $region4: #{tpu_custom_call.1} parent=1 // pred_region
      _
    $region5: #{tpu_custom_call.1} parent=1 // pred_fallthru
      _
    // Predicated region
    $region6: #{tpu_custom_call.1} parent=1 // pred_check
      _
    $region7: #{tpu_custom_call.1} parent=1 // pred_check_branch
      %16 = sbr.rel (0) target = $region9
    $region8: #{tpu_custom_call.1} parent=1 // pred_region
      _
    $region9: #{tpu_custom_call.1} parent=1 // pred_fallthru
      _
    // Predicated region
    $region10: #{tpu_custom_call.1} parent=1 // pred_check
      _
    $region11: #{tpu_custom_call.1} parent=1 // pred_check_branch
      %18 = sbr.rel (0) target = $region13
    $region12: #{tpu_custom_call.1} parent=1 // pred_region
      _
    $region13: #{tpu_custom_call.1} parent=1 // pred_fallthru
      _
    %p20 = scmp.eq.s32.totalorder 0, 0
    // Predicated region
    $region14: #{tpu_custom_call.1} parent=1 // pred_check
      %p21 = pneg %p20
    $region15: #{tpu_custom_call.1} parent=1 // pred_check_branch
      %23 = sbr.rel (%p21) target = $region17
    $region16: #{tpu_custom_call.1} parent=1 // pred_region
      %s24 = sld [smem:[#allocation4]]
      %v25 = vld [vmem:[%s3] sm:$0xf]
      %v26 = vld [vmem:[%s3 + $0x4] sm:$0xf]
      %s27 = scalar_lea.vmem %s2, %s24
      %v28 = vld [vmem:[%s27] sm:$0xff]
      %v29 = vld [vmem:[%s27 + $0x8] sm:$0x3]
      %v30 = vpack.c.bf16 %v29, %v28
      %v33 = vunpack.c.l.b16 %v25
      %v34 = vunpack.c.l.b16 %v26
      %v35 = vpack.c.b16 %v34, %v33
      %vm36 = vcmask 80896
      %v38 = vsel %vm36, %v35, 0
      %vm40 = vcmask 1044480
      %v42 = vsel %vm40, %v30, 0
      %44 = vmatpush.bf16.msra.mxu0 0
      %45 = vmatpush.bf16.msra.mxu0 0
      %46 = vmatpush.bf16.msra.mxu0 0
      %47 = vmatpush.bf16.msra.mxu0 0
      %48 = vmatpush.bf16.msra.mxu0 0
      %49 = vmatpush.bf16.msra.mxu0 0
      %50 = vmatpush.bf16.msra.mxu0 0
      %51 = vmatpush.bf16.msra.mxu0 %v42
      %52 = vmatmul.bf16.gmra.mxu0 %v38
      %v53 = vpop.f32.mrf.mxu0
      %v54 = vadd.f32 0.0, %v53
      %v55 = vpop.f32.mrf.mxu0
      %v56 = vadd.f32 0.0, %v55
      %57 = vdwg.mxu0
      %vm58 = vcmask 105472
      %59 = vst.msk [vmem:[#allocation2] sm:$0xff] %vm58, %v54
      %60 = vst.msk [vmem:[#allocation2 + $0x8] sm:$0xff] %vm58, %v56
      %s61 = sadd.s32 %s24, 16
      %s62 = scalar_lea.vmem %s2, %s61
      %v63 = vld [vmem:[%s62] sm:$0xff]
      %v64 = vld [vmem:[%s62 + $0x8] sm:$0x3]
      %v65 = vpack.c.bf16 %v64, %v63
      %v67 = vsel %vm40, %v65, 0
      %69 = vmatpush.bf16.msra.mxu0 0
      %70 = vmatpush.bf16.msra.mxu0 0
      %71 = vmatpush.bf16.msra.mxu0 0
      %72 = vmatpush.bf16.msra.mxu0 0
      %73 = vmatpush.bf16.msra.mxu0 0
      %74 = vmatpush.bf16.msra.mxu0 0
      %75 = vmatpush.bf16.msra.mxu0 0
      %76 = vmatpush.bf16.msra.mxu0 %v67
      %77 = vmatmul.bf16.gmra.mxu0 %v38
      %v78 = vpop.f32.mrf.mxu0
      %v79 = vadd.f32 0.0, %v78
      %v80 = vpop.f32.mrf.mxu0
      %v81 = vadd.f32 0.0, %v80
      %82 = vdwg.mxu0
      %s83 = scalar_lea.vmem [#allocation2], 16
      %84 = vst.msk [vmem:[%s83] sm:$0xff] %vm58, %v79
      %85 = vst.msk [vmem:[%s83 + $0x8] sm:$0xff] %vm58, %v81
      %s86 = sadd.s32 %s24, 32
      %s87 = scalar_lea.vmem %s2, %s86
      %v88 = vld [vmem:[%s87] sm:$0xff]
      %v89 = vld [vmem:[%s87 + $0x8] sm:$0x3]
      %v90 = vpack.c.bf16 %v89, %v88
      %v92 = vsel %vm40, %v90, 0
      %94 = vmatpush.bf16.msra.mxu0 0
      %95 = vmatpush.bf16.msra.mxu0 0
      %96 = vmatpush.bf16.msra.mxu0 0
      %97 = vmatpush.bf16.msra.mxu0 0
      %98 = vmatpush.bf16.msra.mxu0 0
      %99 = vmatpush.bf16.msra.mxu0 0
      %100 = vmatpush.bf16.msra.mxu0 0
      %101 = vmatpush.bf16.msra.mxu0 %v92
      %102 = vmatmul.bf16.gmra.mxu0 %v38
      %v103 = vpop.f32.mrf.mxu0
      %v104 = vadd.f32 0.0, %v103
      %v105 = vpop.f32.mrf.mxu0
      %v106 = vadd.f32 0.0, %v105
      %107 = vdwg.mxu0
      %s108 = scalar_lea.vmem [#allocation2], 32
      %109 = vst.msk [vmem:[%s108] sm:$0xff] %vm58, %v104
      %110 = vst.msk [vmem:[%s108 + $0x8] sm:$0xff] %vm58, %v106
      %s111 = sadd.s32 %s24, 48
      %s112 = scalar_lea.vmem %s2, %s111
      %v113 = vld [vmem:[%s112] sm:$0xff]
      %v114 = vld [vmem:[%s112 + $0x8] sm:$0x3]
      %v115 = vpack.c.bf16 %v114, %v113
      %v117 = vsel %vm40, %v115, 0
      %119 = vmatpush.bf16.msra.mxu0 0
      %120 = vmatpush.bf16.msra.mxu0 0
      %121 = vmatpush.bf16.msra.mxu0 0
      %122 = vmatpush.bf16.msra.mxu0 0
      %123 = vmatpush.bf16.msra.mxu0 0
      %124 = vmatpush.bf16.msra.mxu0 0
      %125 = vmatpush.bf16.msra.mxu0 0
      %126 = vmatpush.bf16.msra.mxu0 %v117
      %127 = vmatmul.bf16.gmra.mxu0 %v38
      %v128 = vpop.f32.mrf.mxu0
      %v129 = vadd.f32 0.0, %v128
      %v130 = vpop.f32.mrf.mxu0
      %v131 = vadd.f32 0.0, %v130
      %132 = vdwg.mxu0
      %s133 = scalar_lea.vmem [#allocation2], 48
      %134 = vst.msk [vmem:[%s133] sm:$0xff] %vm58, %v129
      %135 = vst.msk [vmem:[%s133 + $0x8] sm:$0xff] %vm58, %v131
      %s136 = sadd.s32 %s24, 64
      %s137 = scalar_lea.vmem %s2, %s136
      %v138 = vld [vmem:[%s137] sm:$0xff]
      %v139 = vld [vmem:[%s137 + $0x8] sm:$0x3]
      %v140 = vpack.c.bf16 %v139, %v138
      %v142 = vsel %vm40, %v140, 0
      %144 = vmatpush.bf16.msra.mxu0 0
      %145 = vmatpush.bf16.msra.mxu0 0
      %146 = vmatpush.bf16.msra.mxu0 0
      %147 = vmatpush.bf16.msra.mxu0 0
      %148 = vmatpush.bf16.msra.mxu0 0
      %149 = vmatpush.bf16.msra.mxu0 0
      %150 = vmatpush.bf16.msra.mxu0 0
      %151 = vmatpush.bf16.msra.mxu0 %v142
      %152 = vmatmul.bf16.gmra.mxu0 %v38
      %v153 = vpop.f32.mrf.mxu0
      %v154 = vadd.f32 0.0, %v153
      %v155 = vpop.f32.mrf.mxu0
      %v156 = vadd.f32 0.0, %v155
      %157 = vdwg.mxu0
      %s158 = scalar_lea.vmem [#allocation2], 64
      %159 = vst.msk [vmem:[%s158] sm:$0xff] %vm58, %v154
      %160 = vst.msk [vmem:[%s158 + $0x8] sm:$0xff] %vm58, %v156
      %s161 = sadd.s32 %s24, 80
      %s162 = scalar_lea.vmem %s2, %s161
      %v163 = vld [vmem:[%s162] sm:$0xff]
      %v164 = vld [vmem:[%s162 + $0x8] sm:$0x3]
      %v165 = vpack.c.bf16 %v164, %v163
      %v167 = vsel %vm40, %v165, 0
      %169 = vmatpush.bf16.msra.mxu0 0
      %170 = vmatpush.bf16.msra.mxu0 0
      %171 = vmatpush.bf16.msra.mxu0 0
      %172 = vmatpush.bf16.msra.mxu0 0
      %173 = vmatpush.bf16.msra.mxu0 0
      %174 = vmatpush.bf16.msra.mxu0 0
      %175 = vmatpush.bf16.msra.mxu0 0
      %176 = vmatpush.bf16.msra.mxu0 %v167
      %177 = vmatmul.bf16.gmra.mxu0 %v38
      %v178 = vpop.f32.mrf.mxu0
      %v179 = vadd.f32 0.0, %v178
      %v180 = vpop.f32.mrf.mxu0
      %v181 = vadd.f32 0.0, %v180
      %182 = vdwg.mxu0
      %s183 = scalar_lea.vmem [#allocation2], 80
      %184 = vst.msk [vmem:[%s183] sm:$0xff] %vm58, %v179
      %185 = vst.msk [vmem:[%s183 + $0x8] sm:$0xff] %vm58, %v181
    $region17: #{tpu_custom_call.1} parent=1 // pred_fallthru
      _
    %s186 = sld [smem:[#allocation5]]
    %v187 = vld [vmem:[%s4] sm:$0xf]
    %v188 = vld [vmem:[%s4 + $0x4] sm:$0x7]
    %s189 = sshra.s32 %s186, 7
    %s190 = sand.u32 %s186, 127
    %s191 = scalar_lea.vmem [#allocation2], %s189
    %v192 = vld [vmem:[%s191] sm:$0xff]
    %v193 = vld [vmem:[%s191 + $0x8] sm:$0xff]
    %v194 = vpack.c.bf16 %v193, %v192
    %v197 = vunpack.c.l.b16 %v187
    %v198 = vunpack.c.l.b16 %v188
    %v199 = vpack.c.b16 %v198, %v197
    %vm200 = vcmask 105472
    %v202 = vsel %vm200, %v194, 0
    %vm204 = vcmask 1045504
    %vm205 = vcmask 1046528
    %v206 = vsel %vm204, 4294967295, 65535
    %v207 = vsel %vm205, %v206, 0
    %v209 = vand.u32 %v199, %v207
    %211 = vmatpush.bf16.msra.mxu0 0
    %212 = vmatpush.bf16.msra.mxu0 0
    %213 = vmatpush.bf16.msra.mxu0 0
    %214 = vmatpush.bf16.msra.mxu0 0
    %215 = vmatpush.bf16.msra.mxu0 0
    %216 = vmatpush.bf16.msra.mxu0 0
    %217 = vmatpush.bf16.msra.mxu0 0
    %218 = vmatpush.bf16.msra.mxu0 %v209
    %219 = vmatmul.bf16.gmra.mxu0 %v202
    %v220 = vpop.f32.mrf.mxu0
    %v221 = vadd.f32 0.0, %v220
    %v222 = vpop.f32.mrf.mxu0
    %v223 = vadd.f32 0.0, %v222
    %224 = vdwg.mxu0
    %vm225 = vcmask 130048
    %226 = vst.msk [vmem:[#allocation6] sm:$0xff] %vm225, %v221
    %227 = vst.msk [vmem:[#allocation6 + $0x8] sm:$0xff] %vm225, %v223
    %s228 = sadd.s32 %s189, 16
    %s229 = scalar_lea.vmem [#allocation2], %s228
    %v230 = vld [vmem:[%s229] sm:$0xff]
    %v231 = vld [vmem:[%s229 + $0x8] sm:$0xff]
    %v232 = vpack.c.bf16 %v231, %v230
    %v234 = vsel %vm200, %v232, 0
    %236 = vmatpush.bf16.msra.mxu0 0
    %237 = vmatpush.bf16.msra.mxu0 0
    %238 = vmatpush.bf16.msra.mxu0 0
    %239 = vmatpush.bf16.msra.mxu0 0
    %240 = vmatpush.bf16.msra.mxu0 0
    %241 = vmatpush.bf16.msra.mxu0 0
    %242 = vmatpush.bf16.msra.mxu0 0
    %243 = vmatpush.bf16.msra.mxu0 %v209
    %244 = vmatmul.bf16.gmra.mxu0 %v234
    %v245 = vpop.f32.mrf.mxu0
    %v246 = vadd.f32 0.0, %v245
    %v247 = vpop.f32.mrf.mxu0
    %v248 = vadd.f32 0.0, %v247
    %249 = vdwg.mxu0
    %s250 = scalar_lea.vmem [#allocation6], 16
    %251 = vst.msk [vmem:[%s250] sm:$0xff] %vm225, %v246
    %252 = vst.msk [vmem:[%s250 + $0x8] sm:$0xff] %vm225, %v248
    %s253 = sadd.s32 %s189, 32
    %s254 = scalar_lea.vmem [#allocation2], %s253
    %v255 = vld [vmem:[%s254] sm:$0xff]
    %v256 = vld [vmem:[%s254 + $0x8] sm:$0xff]
    %v257 = vpack.c.bf16 %v256, %v255
    %v259 = vsel %vm200, %v257, 0
    %261 = vmatpush.bf16.msra.mxu0 0
    %262 = vmatpush.bf16.msra.mxu0 0
    %263 = vmatpush.bf16.msra.mxu0 0
    %264 = vmatpush.bf16.msra.mxu0 0
    %265 = vmatpush.bf16.msra.mxu0 0
    %266 = vmatpush.bf16.msra.mxu0 0
    %267 = vmatpush.bf16.msra.mxu0 0
    %268 = vmatpush.bf16.msra.mxu0 %v209
    %269 = vmatmul.bf16.gmra.mxu0 %v259
    %v270 = vpop.f32.mrf.mxu0
    %v271 = vadd.f32 0.0, %v270
    %v272 = vpop.f32.mrf.mxu0
    %v273 = vadd.f32 0.0, %v272
    %274 = vdwg.mxu0
    %s275 = scalar_lea.vmem [#allocation6], 32
    %276 = vst.msk [vmem:[%s275] sm:$0xff] %vm225, %v271
    %277 = vst.msk [vmem:[%s275 + $0x8] sm:$0xff] %vm225, %v273
    %s278 = sadd.s32 %s189, 48
    %s279 = scalar_lea.vmem [#allocation2], %s278
    %v280 = vld [vmem:[%s279] sm:$0xff]
    %v281 = vld [vmem:[%s279 + $0x8] sm:$0xff]
    %v282 = vpack.c.bf16 %v281, %v280
    %v284 = vsel %vm200, %v282, 0
    %286 = vmatpush.bf16.msra.mxu0 0
    %287 = vmatpush.bf16.msra.mxu0 0
    %288 = vmatpush.bf16.msra.mxu0 0
    %289 = vmatpush.bf16.msra.mxu0 0
    %290 = vmatpush.bf16.msra.mxu0 0
    %291 = vmatpush.bf16.msra.mxu0 0
    %292 = vmatpush.bf16.msra.mxu0 0
    %293 = vmatpush.bf16.msra.mxu0 %v209
    %294 = vmatmul.bf16.gmra.mxu0 %v284
    %v295 = vpop.f32.mrf.mxu0
    %v296 = vadd.f32 0.0, %v295
    %v297 = vpop.f32.mrf.mxu0
    %v298 = vadd.f32 0.0, %v297
    %299 = vdwg.mxu0
    %s300 = scalar_lea.vmem [#allocation6], 48
    %301 = vst.msk [vmem:[%s300] sm:$0xff] %vm225, %v296
    %302 = vst.msk [vmem:[%s300 + $0x8] sm:$0xff] %vm225, %v298
    %s303 = sadd.s32 %s189, 64
    %s304 = scalar_lea.vmem [#allocation2], %s303
    %v305 = vld [vmem:[%s304] sm:$0xff]
    %v306 = vld [vmem:[%s304 + $0x8] sm:$0xff]
    %v307 = vpack.c.bf16 %v306, %v305
    %v309 = vsel %vm200, %v307, 0
    %311 = vmatpush.bf16.msra.mxu0 0
    %312 = vmatpush.bf16.msra.mxu0 0
    %313 = vmatpush.bf16.msra.mxu0 0
    %314 = vmatpush.bf16.msra.mxu0 0
    %315 = vmatpush.bf16.msra.mxu0 0
    %316 = vmatpush.bf16.msra.mxu0 0
    %317 = vmatpush.bf16.msra.mxu0 0
    %318 = vmatpush.bf16.msra.mxu0 %v209
    %319 = vmatmul.bf16.gmra.mxu0 %v309
    %v320 = vpop.f32.mrf.mxu0
    %v321 = vadd.f32 0.0, %v320
    %v322 = vpop.f32.mrf.mxu0
    %v323 = vadd.f32 0.0, %v322
    %324 = vdwg.mxu0
    %s325 = scalar_lea.vmem [#allocation6], 64
    %326 = vst.msk [vmem:[%s325] sm:$0xff] %vm225, %v321
    %327 = vst.msk [vmem:[%s325 + $0x8] sm:$0xff] %vm225, %v323
    %s328 = sadd.s32 %s189, 80
    %s329 = scalar_lea.vmem [#allocation2], %s328
    %v330 = vld [vmem:[%s329] sm:$0xff]
    %v331 = vld [vmem:[%s329 + $0x8] sm:$0xff]
    %v332 = vpack.c.bf16 %v331, %v330
    %v334 = vsel %vm200, %v332, 0
    %336 = vmatpush.bf16.msra.mxu0 0
    %337 = vmatpush.bf16.msra.mxu0 0
    %338 = vmatpush.bf16.msra.mxu0 0
    %339 = vmatpush.bf16.msra.mxu0 0
    %340 = vmatpush.bf16.msra.mxu0 0
    %341 = vmatpush.bf16.msra.mxu0 0
    %342 = vmatpush.bf16.msra.mxu0 0
    %343 = vmatpush.bf16.msra.mxu0 %v209
    %344 = vmatmul.bf16.gmra.mxu0 %v334
    %v345 = vpop.f32.mrf.mxu0
    %v346 = vadd.f32 0.0, %v345
    %v347 = vpop.f32.mrf.mxu0
    %v348 = vadd.f32 0.0, %v347
    %349 = vdwg.mxu0
    %s350 = scalar_lea.vmem [#allocation6], 80
    %351 = vst.msk [vmem:[%s350] sm:$0xff] %vm225, %v346
    %352 = vst.msk [vmem:[%s350 + $0x8] sm:$0xff] %vm225, %v348
    // Predicated region
    $region18: #{tpu_custom_call.1} parent=1 // pred_check
      _
    $region19: #{tpu_custom_call.1} parent=1 // pred_check_branch
      %354 = sbr.rel (0) target = $region21
    $region20: #{tpu_custom_call.1} parent=1 // pred_region
      %356 = vsyncadd [#allocation7], 0
      %s357 = sshll.u32 [#allocation6], 4
      %s358 = int_to_ptr.vmem [resolvable:$true] %s357
      %s359 = sshll.u32 %s5, 4
      %s360 = int_to_ptr.hbm [resolvable:$true] %s359
      %365 = dma.vmem_to_hbm [thread:$0]  %s358, 1536, %s360, [#allocation7], 128, 128, 8
    $region21: #{tpu_custom_call.1} parent=1 // pred_fallthru
      _
    // Predicated region
    $region22: #{tpu_custom_call.1} parent=1 // pred_check
      _
    $region23: #{tpu_custom_call.1} parent=1 // pred_check_branch
      %367 = sbr.rel (0) target = $region25
    $region24: #{tpu_custom_call.1} parent=1 // pred_region
      %369 = dma.done [#allocation7], 1536
    $region25: #{tpu_custom_call.1} parent=1 // pred_fallthru
      _
    %370 = vsyncpa [#allocation7], 1

</llo_original>
